<compile_context>
chip_gen: v7x
topology: tpu7x:2x2x1
jax: 0.10.0
libtpu: 0.0.40
codegen_flags: <defaults>
</compile_context>

<pallas_src>
import functools

import jax
import jax.numpy as jnp
from jax.experimental import pallas as pl
from jax.experimental.pallas import tpu as pltpu


# ----------------------------- Pallas kernel --------------------------------

def _stacked_linear(z, w, n, h_in):
    """concat_g(z_g) @ w  computed from the stacked form:
       sum_g  z[g*n:(g+1)*n, :] @ w[g*h_in:(g+1)*h_in, :]   (f32 accumulate)."""
    acc = None
    for g in range(3):  # static unroll
        zg = z[g * n:(g + 1) * n, :].astype(jnp.bfloat16)
        wg = w[g * h_in:(g + 1) * h_in, :]
        p = jnp.dot(zg, wg, preferred_element_type=jnp.float32)
        acc = p if acc is None else acc + p
    return acc


def _forward_kernel(*refs, n_mid):
    # refs = x, a_stack, w1, b1, (wx_i, bx_i)*n_mid, w2, b2, wconv, bconv, out
    x_ref, a_ref, w1_ref, b1_ref = refs[:4]
    mid_refs = refs[4:4 + 2 * n_mid]
    w2_ref, b2_ref, wc_ref, bc_ref, o_ref = refs[4 + 2 * n_mid:]

    n = x_ref.shape[0]
    h = w1_ref.shape[1]
    c = w2_ref.shape[1]

    a = a_ref[...]  # [3N, N] bf16 — loaded once, resident for every layer.

    # ---- layer 1: lin1 -> stacked graph aggregation -> +bias1 -> relu ------
    y = jnp.dot(x_ref[...], w1_ref[...], preferred_element_type=jnp.float32)   # [N, H]
    z = jnp.dot(a, y.astype(jnp.bfloat16), preferred_element_type=jnp.float32) # [3N, H]
    z = jnp.maximum(z + b1_ref[...], 0.0)

    # ---- middle layers: linx -> aggregation -> +biasx -> relu --------------
    for i in range(n_mid):  # static unroll (layer count is static)
        w_ref = mid_refs[2 * i]
        b_ref = mid_refs[2 * i + 1]
        y = _stacked_linear(z, w_ref[...], n, h)                               # [N, H]
        z = jnp.dot(a, y.astype(jnp.bfloat16), preferred_element_type=jnp.float32)
        z = jnp.maximum(z + b_ref[...], 0.0)

    # ---- last layer: lin2 -> aggregation -> +bias2 (no relu) ---------------
    y = _stacked_linear(z, w2_ref[...], n, h)                                  # [N, C]
    z = jnp.dot(a, y.astype(jnp.bfloat16), preferred_element_type=jnp.float32) # [3N, C]
    z = z + b2_ref[...]

    # ---- fused 1x1 Conv1d over the concatenated channels + bias ------------
    out = _stacked_linear(z, wc_ref[...], n, c) + bc_ref[...]                  # [N, C]
    o_ref[...] = out.astype(o_ref.dtype)  # single full-width store


def sym_reg_layer_x_forward(params, x, a1, a2, a3):
    """Forward pass of SymRegLayerX (dropout=False -> dropout is a no-op)."""
    n = x.shape[0]
    c = params["w2"].shape[1]
    n_mid = len(params["wx"])

    cd = jnp.bfloat16  # MXU operand dtype; accumulation stays f32.
    a_stack = jnp.concatenate([a1, a2, a3], axis=0).astype(cd)  # [3N, N]

    inputs = [x.astype(cd), a_stack, params["w1"].astype(cd), params["bias1"]]
    for wl, bl in zip(params["wx"], params["bx"]):
        inputs += [wl.astype(cd), bl]
    inputs += [params["w2"].astype(cd), params["bias2"],
               params["wconv"].astype(cd), params["bconv"]]

    in_specs = [pl.BlockSpec(t.shape, lambda i: (0, 0)) for t in inputs]
    out_spec = pl.BlockSpec((n, c), lambda i: (0, 0))

    # Whole-A-resident design: make sure the scoped VMEM limit covers it
    # (with headroom), capped at a value safe on every generation.
    total_bytes = sum(t.size * t.dtype.itemsize for t in inputs) + n * c * 4
    vmem_limit = int(min(max(4 * total_bytes + (4 << 20), 16 << 20), 32 << 20))

    kernel = functools.partial(_forward_kernel, n_mid=n_mid)
    return pl.pallas_call(
        kernel,
        out_shape=jax.ShapeDtypeStruct((n, c), jnp.float32),
        grid=(1,),
        in_specs=in_specs,
        out_specs=out_spec,
        compiler_params=pltpu.CompilerParams(
            dimension_semantics=("arbitrary",),
            vmem_limit_bytes=vmem_limit,
        ),
    )(*inputs)


# --------------------------- glue (plain JAX) -------------------------------

def dense_gcn_norm(edge_index, edge_weight, num_nodes):
    """Dense equivalent of PyG gcn_norm + propagate(aggr='add'):
       A[col, row] accumulates edge weights (edge row->col), self loops added
       with fill 1.0, degree = in-degree (row sums of A+I), symmetric norm
       D^{-1/2} (A + I) D^{-1/2} — matches gcn_norm's
       deg = scatter_add(w, col); norm = dis[row] * w * dis[col]."""
    row, col = edge_index[0], edge_index[1]
    if edge_weight is None:
        edge_weight = jnp.ones((row.shape[0],), dtype=jnp.float32)
    a = jnp.zeros((num_nodes, num_nodes), jnp.float32).at[col, row].add(edge_weight)
    # add_remaining_self_loops(fill=1.0); inputs are built without self loops.
    a = a + jnp.eye(num_nodes, dtype=jnp.float32)
    deg = a.sum(axis=1)
    dis = jnp.where(deg > 0, 1.0 / jnp.sqrt(deg), 0.0)
    return dis[:, None] * a * dis[None, :]


def init_params(key, input_dim, nhid, out_dim, layer):
    ks = jax.random.split(key, 4 + (layer - 2))
    scale = 0.1
    params = {
        # lin1: Linear(input_dim, nhid, bias=False) stored as [in, out]
        "w1": scale * jax.random.normal(ks[0], (input_dim, nhid), jnp.float32),
        # lin2: Linear(nhid*3, out_dim, bias=False)
        "w2": scale * jax.random.normal(ks[1], (3 * nhid, out_dim), jnp.float32),
        "bias1": jnp.zeros((1, nhid), jnp.float32),
        "bias2": jnp.zeros((1, out_dim), jnp.float32),
        # Conv1d(out_dim*3, out_dim, k=1): stored transposed/squeezed [3C, C]
        "wconv": scale * jax.random.normal(ks[2], (3 * out_dim, out_dim), jnp.float32),
        "bconv": scale * jax.random.normal(ks[3], (1, out_dim), jnp.float32),
        # linx: Linear(nhid*3, nhid, bias=False) x (layer-2); biasx zeros
        "wx": [scale * jax.random.normal(ks[4 + i], (3 * nhid, nhid), jnp.float32)
               for i in range(layer - 2)],
        "bx": [jnp.zeros((1, nhid), jnp.float32) for _ in range(layer - 2)],
    }
    return params


# --------------------------------- main -------------------------------------

if __name__ == "__main__":
    N = 16          # number of graph nodes
    INPUT_DIM = 8
    NHID = 32
    OUT_DIM = 8
    LAYER = 3
    E = 40          # edges per graph

    key = jax.random.PRNGKey(0)
    (k_x, k_p, k_e1, k_e2, k_e3, k_w2, k_w3, k_off1, k_off2, k_off3) = (
        jax.random.split(key, 10)
    )

    x = jax.random.normal(k_x, (N, INPUT_DIM), jnp.float32)

    def make_edges(k_src, k_off):
        src = jax.random.randint(k_src, (E,), 0, N)
        off = jax.random.randint(k_off, (E,), 1, N)  # avoid self loops
        dst = (src + off) % N
        return jnp.stack([src, dst], axis=0).astype(jnp.int32)

    edge_index = make_edges(k_e1, k_off1)                  # no edge weights
    edge_in = make_edges(k_e2, k_off2)
    in_w = jax.random.uniform(k_w2, (E,), jnp.float32, 0.5, 1.5)
    edge_out = make_edges(k_e3, k_off3)
    out_w = jax.random.uniform(k_w3, (E,), jnp.float32, 0.5, 1.5)

    # Dense GCN-normalized adjacencies (sparse scatter preprocessing kept in JAX).
    a1 = dense_gcn_norm(edge_index, None, N)
    a2 = dense_gcn_norm(edge_in, in_w, N)
    a3 = dense_gcn_norm(edge_out, out_w, N)

    params = init_params(k_p, INPUT_DIM, NHID, OUT_DIM, LAYER)

    out = sym_reg_layer_x_forward(params, x, a1, a2, a3)
    out = jax.block_until_ready(out)

    assert out.shape == (N, OUT_DIM)
    assert jnp.all(jnp.isfinite(out))
    print("KERNEL_OK")
</pallas_src>

<mosaic_0001>
module attributes {stable_mosaic.version = 11 : i64} {
  func.func @_forward_kernel(%arg0: i32, %arg1: memref<16x8xbf16, #tpu.memory_space<vmem>>, %arg2: memref<48x16xbf16, #tpu.memory_space<vmem>>, %arg3: memref<8x32xbf16, #tpu.memory_space<vmem>>, %arg4: memref<1x32xf32, #tpu.memory_space<vmem>>, %arg5: memref<96x32xbf16, #tpu.memory_space<vmem>>, %arg6: memref<1x32xf32, #tpu.memory_space<vmem>>, %arg7: memref<96x8xbf16, #tpu.memory_space<vmem>>, %arg8: memref<1x8xf32, #tpu.memory_space<vmem>>, %arg9: memref<24x8xbf16, #tpu.memory_space<vmem>>, %arg10: memref<1x8xf32, #tpu.memory_space<vmem>>, %arg11: memref<16x8xf32, #tpu.memory_space<vmem>>) attributes {dimension_semantics = [#tpu.dimension_semantics<arbitrary>], iteration_bounds = array<i64: 1>, scalar_prefetch = 0 : i64, scratch_operands = 0 : i64, tpu.core_type = #tpu.core_type<tc>, window_params = [{pipeline_mode = #tpu.pipeline_mode<synchronous>, transform_indices = @transform_0, window_bounds = array<i64: 16, 8>}, {pipeline_mode = #tpu.pipeline_mode<synchronous>, transform_indices = @transform_1, window_bounds = array<i64: 48, 16>}, {pipeline_mode = #tpu.pipeline_mode<synchronous>, transform_indices = @transform_2, window_bounds = array<i64: 8, 32>}, {pipeline_mode = #tpu.pipeline_mode<synchronous>, transform_indices = @transform_3, window_bounds = array<i64: 1, 32>}, {pipeline_mode = #tpu.pipeline_mode<synchronous>, transform_indices = @transform_4, window_bounds = array<i64: 96, 32>}, {pipeline_mode = #tpu.pipeline_mode<synchronous>, transform_indices = @transform_5, window_bounds = array<i64: 1, 32>}, {pipeline_mode = #tpu.pipeline_mode<synchronous>, transform_indices = @transform_6, window_bounds = array<i64: 96, 8>}, {pipeline_mode = #tpu.pipeline_mode<synchronous>, transform_indices = @transform_7, window_bounds = array<i64: 1, 8>}, {pipeline_mode = #tpu.pipeline_mode<synchronous>, transform_indices = @transform_8, window_bounds = array<i64: 24, 8>}, {pipeline_mode = #tpu.pipeline_mode<synchronous>, transform_indices = @transform_9, window_bounds = array<i64: 1, 8>}, {pipeline_mode = #tpu.pipeline_mode<synchronous>, transform_indices = @transform_10, window_bounds = array<i64: 16, 8>}]} {
    %c0 = arith.constant 0 : index
    %c0_0 = arith.constant 0 : index
    %0 = vector.load %arg2[%c0, %c0_0] : memref<48x16xbf16, #tpu.memory_space<vmem>>, vector<48x16xbf16>
    %c0_1 = arith.constant 0 : index
    %c0_2 = arith.constant 0 : index
    %1 = vector.load %arg1[%c0_1, %c0_2] : memref<16x8xbf16, #tpu.memory_space<vmem>>, vector<16x8xbf16>
    %c0_3 = arith.constant 0 : index
    %c0_4 = arith.constant 0 : index
    %2 = vector.load %arg3[%c0_3, %c0_4] : memref<8x32xbf16, #tpu.memory_space<vmem>>, vector<8x32xbf16>
    %cst = arith.constant dense<0.000000e+00> : vector<16x32xf32>
    %3 = tpu.matmul %1, %2, %cst {dimension_numbers = #tpu.dot_dimension_numbers<[1], [0], [0], [1], [0, 0, 1, 1], [], []>} : vector<16x8xbf16>, vector<8x32xbf16>, vector<16x32xf32> -> vector<16x32xf32>
    %4 = arith.truncf %3 : vector<16x32xf32> to vector<16x32xbf16>
    %cst_5 = arith.constant dense<0.000000e+00> : vector<48x32xf32>
    %5 = tpu.matmul %0, %4, %cst_5 {dimension_numbers = #tpu.dot_dimension_numbers<[1], [0], [0], [1], [0, 0, 1, 1], [], []>} : vector<48x16xbf16>, vector<16x32xbf16>, vector<48x32xf32> -> vector<48x32xf32>
    %c0_6 = arith.constant 0 : index
    %c0_7 = arith.constant 0 : index
    %6 = vector.load %arg4[%c0_6, %c0_7] : memref<1x32xf32, #tpu.memory_space<vmem>>, vector<1x32xf32>
    %7 = vector.broadcast %6 : vector<1x32xf32> to vector<48x32xf32>
    %8 = arith.addf %5, %7 : vector<48x32xf32>
    %cst_8 = arith.constant 0.000000e+00 : f32
    %9 = vector.broadcast %cst_8 : f32 to vector<48x32xf32>
    %10 = arith.maximumf %8, %9 : vector<48x32xf32>
    %c0_9 = arith.constant 0 : index
    %c0_10 = arith.constant 0 : index
    %11 = vector.load %arg5[%c0_9, %c0_10] : memref<96x32xbf16, #tpu.memory_space<vmem>>, vector<96x32xbf16>
    %12 = vector.extract_strided_slice %10 {offsets = [0, 0], sizes = [16, 32], strides = [1, 1]} : vector<48x32xf32> to vector<16x32xf32>
    %13 = arith.truncf %12 : vector<16x32xf32> to vector<16x32xbf16>
    %14 = vector.extract_strided_slice %11 {offsets = [0, 0], sizes = [32, 32], strides = [1, 1]} : vector<96x32xbf16> to vector<32x32xbf16>
    %cst_11 = arith.constant dense<0.000000e+00> : vector<16x32xf32>
    %15 = tpu.matmul %13, %14, %cst_11 {dimension_numbers = #tpu.dot_dimension_numbers<[1], [0], [0], [1], [0, 0, 1, 1], [], []>} : vector<16x32xbf16>, vector<32x32xbf16>, vector<16x32xf32> -> vector<16x32xf32>
    %16 = vector.extract_strided_slice %10 {offsets = [16, 0], sizes = [16, 32], strides = [1, 1]} : vector<48x32xf32> to vector<16x32xf32>
    %17 = arith.truncf %16 : vector<16x32xf32> to vector<16x32xbf16>
    %18 = vector.extract_strided_slice %11 {offsets = [32, 0], sizes = [32, 32], strides = [1, 1]} : vector<96x32xbf16> to vector<32x32xbf16>
    %cst_12 = arith.constant dense<0.000000e+00> : vector<16x32xf32>
    %19 = tpu.matmul %17, %18, %cst_12 {dimension_numbers = #tpu.dot_dimension_numbers<[1], [0], [0], [1], [0, 0, 1, 1], [], []>} : vector<16x32xbf16>, vector<32x32xbf16>, vector<16x32xf32> -> vector<16x32xf32>
    %20 = arith.addf %15, %19 : vector<16x32xf32>
    %21 = vector.extract_strided_slice %10 {offsets = [32, 0], sizes = [16, 32], strides = [1, 1]} : vector<48x32xf32> to vector<16x32xf32>
    %22 = arith.truncf %21 : vector<16x32xf32> to vector<16x32xbf16>
    %23 = vector.extract_strided_slice %11 {offsets = [64, 0], sizes = [32, 32], strides = [1, 1]} : vector<96x32xbf16> to vector<32x32xbf16>
    %cst_13 = arith.constant dense<0.000000e+00> : vector<16x32xf32>
    %24 = tpu.matmul %22, %23, %cst_13 {dimension_numbers = #tpu.dot_dimension_numbers<[1], [0], [0], [1], [0, 0, 1, 1], [], []>} : vector<16x32xbf16>, vector<32x32xbf16>, vector<16x32xf32> -> vector<16x32xf32>
    %25 = arith.addf %20, %24 : vector<16x32xf32>
    %26 = arith.truncf %25 : vector<16x32xf32> to vector<16x32xbf16>
    %cst_14 = arith.constant dense<0.000000e+00> : vector<48x32xf32>
    %27 = tpu.matmul %0, %26, %cst_14 {dimension_numbers = #tpu.dot_dimension_numbers<[1], [0], [0], [1], [0, 0, 1, 1], [], []>} : vector<48x16xbf16>, vector<16x32xbf16>, vector<48x32xf32> -> vector<48x32xf32>
    %c0_15 = arith.constant 0 : index
    %c0_16 = arith.constant 0 : index
    %28 = vector.load %arg6[%c0_15, %c0_16] : memref<1x32xf32, #tpu.memory_space<vmem>>, vector<1x32xf32>
    %29 = vector.broadcast %28 : vector<1x32xf32> to vector<48x32xf32>
    %30 = arith.addf %27, %29 : vector<48x32xf32>
    %cst_17 = arith.constant 0.000000e+00 : f32
    %31 = vector.broadcast %cst_17 : f32 to vector<48x32xf32>
    %32 = arith.maximumf %30, %31 : vector<48x32xf32>
    %c0_18 = arith.constant 0 : index
    %c0_19 = arith.constant 0 : index
    %33 = vector.load %arg7[%c0_18, %c0_19] : memref<96x8xbf16, #tpu.memory_space<vmem>>, vector<96x8xbf16>
    %34 = vector.extract_strided_slice %32 {offsets = [0, 0], sizes = [16, 32], strides = [1, 1]} : vector<48x32xf32> to vector<16x32xf32>
    %35 = arith.truncf %34 : vector<16x32xf32> to vector<16x32xbf16>
    %36 = vector.extract_strided_slice %33 {offsets = [0, 0], sizes = [32, 8], strides = [1, 1]} : vector<96x8xbf16> to vector<32x8xbf16>
    %cst_20 = arith.constant dense<0.000000e+00> : vector<16x8xf32>
    %37 = tpu.matmul %35, %36, %cst_20 {dimension_numbers = #tpu.dot_dimension_numbers<[1], [0], [0], [1], [0, 0, 1, 1], [], []>} : vector<16x32xbf16>, vector<32x8xbf16>, vector<16x8xf32> -> vector<16x8xf32>
    %38 = vector.extract_strided_slice %32 {offsets = [16, 0], sizes = [16, 32], strides = [1, 1]} : vector<48x32xf32> to vector<16x32xf32>
    %39 = arith.truncf %38 : vector<16x32xf32> to vector<16x32xbf16>
    %40 = vector.extract_strided_slice %33 {offsets = [32, 0], sizes = [32, 8], strides = [1, 1]} : vector<96x8xbf16> to vector<32x8xbf16>
    %cst_21 = arith.constant dense<0.000000e+00> : vector<16x8xf32>
    %41 = tpu.matmul %39, %40, %cst_21 {dimension_numbers = #tpu.dot_dimension_numbers<[1], [0], [0], [1], [0, 0, 1, 1], [], []>} : vector<16x32xbf16>, vector<32x8xbf16>, vector<16x8xf32> -> vector<16x8xf32>
    %42 = arith.addf %37, %41 : vector<16x8xf32>
    %43 = vector.extract_strided_slice %32 {offsets = [32, 0], sizes = [16, 32], strides = [1, 1]} : vector<48x32xf32> to vector<16x32xf32>
    %44 = arith.truncf %43 : vector<16x32xf32> to vector<16x32xbf16>
    %45 = vector.extract_strided_slice %33 {offsets = [64, 0], sizes = [32, 8], strides = [1, 1]} : vector<96x8xbf16> to vector<32x8xbf16>
    %cst_22 = arith.constant dense<0.000000e+00> : vector<16x8xf32>
    %46 = tpu.matmul %44, %45, %cst_22 {dimension_numbers = #tpu.dot_dimension_numbers<[1], [0], [0], [1], [0, 0, 1, 1], [], []>} : vector<16x32xbf16>, vector<32x8xbf16>, vector<16x8xf32> -> vector<16x8xf32>
    %47 = arith.addf %42, %46 : vector<16x8xf32>
    %48 = arith.truncf %47 : vector<16x8xf32> to vector<16x8xbf16>
    %cst_23 = arith.constant dense<0.000000e+00> : vector<48x8xf32>
    %49 = tpu.matmul %0, %48, %cst_23 {dimension_numbers = #tpu.dot_dimension_numbers<[1], [0], [0], [1], [0, 0, 1, 1], [], []>} : vector<48x16xbf16>, vector<16x8xbf16>, vector<48x8xf32> -> vector<48x8xf32>
    %c0_24 = arith.constant 0 : index
    %c0_25 = arith.constant 0 : index
    %50 = vector.load %arg8[%c0_24, %c0_25] : memref<1x8xf32, #tpu.memory_space<vmem>>, vector<1x8xf32>
    %51 = vector.broadcast %50 : vector<1x8xf32> to vector<48x8xf32>
    %52 = arith.addf %49, %51 : vector<48x8xf32>
    %c0_26 = arith.constant 0 : index
    %c0_27 = arith.constant 0 : index
    %53 = vector.load %arg9[%c0_26, %c0_27] : memref<24x8xbf16, #tpu.memory_space<vmem>>, vector<24x8xbf16>
    %54 = vector.extract_strided_slice %52 {offsets = [0, 0], sizes = [16, 8], strides = [1, 1]} : vector<48x8xf32> to vector<16x8xf32>
    %55 = arith.truncf %54 : vector<16x8xf32> to vector<16x8xbf16>
    %56 = vector.extract_strided_slice %53 {offsets = [0, 0], sizes = [8, 8], strides = [1, 1]} : vector<24x8xbf16> to vector<8x8xbf16>
    %cst_28 = arith.constant dense<0.000000e+00> : vector<16x8xf32>
    %57 = tpu.matmul %55, %56, %cst_28 {dimension_numbers = #tpu.dot_dimension_numbers<[1], [0], [0], [1], [0, 0, 1, 1], [], []>} : vector<16x8xbf16>, vector<8x8xbf16>, vector<16x8xf32> -> vector<16x8xf32>
    %58 = vector.extract_strided_slice %52 {offsets = [16, 0], sizes = [16, 8], strides = [1, 1]} : vector<48x8xf32> to vector<16x8xf32>
    %59 = arith.truncf %58 : vector<16x8xf32> to vector<16x8xbf16>
    %60 = vector.extract_strided_slice %53 {offsets = [8, 0], sizes = [8, 8], strides = [1, 1]} : vector<24x8xbf16> to vector<8x8xbf16>
    %cst_29 = arith.constant dense<0.000000e+00> : vector<16x8xf32>
    %61 = tpu.matmul %59, %60, %cst_29 {dimension_numbers = #tpu.dot_dimension_numbers<[1], [0], [0], [1], [0, 0, 1, 1], [], []>} : vector<16x8xbf16>, vector<8x8xbf16>, vector<16x8xf32> -> vector<16x8xf32>
    %62 = arith.addf %57, %61 : vector<16x8xf32>
    %63 = vector.extract_strided_slice %52 {offsets = [32, 0], sizes = [16, 8], strides = [1, 1]} : vector<48x8xf32> to vector<16x8xf32>
    %64 = arith.truncf %63 : vector<16x8xf32> to vector<16x8xbf16>
    %65 = vector.extract_strided_slice %53 {offsets = [16, 0], sizes = [8, 8], strides = [1, 1]} : vector<24x8xbf16> to vector<8x8xbf16>
    %cst_30 = arith.constant dense<0.000000e+00> : vector<16x8xf32>
    %66 = tpu.matmul %64, %65, %cst_30 {dimension_numbers = #tpu.dot_dimension_numbers<[1], [0], [0], [1], [0, 0, 1, 1], [], []>} : vector<16x8xbf16>, vector<8x8xbf16>, vector<16x8xf32> -> vector<16x8xf32>
    %67 = arith.addf %62, %66 : vector<16x8xf32>
    %c0_31 = arith.constant 0 : index
    %c0_32 = arith.constant 0 : index
    %68 = vector.load %arg10[%c0_31, %c0_32] : memref<1x8xf32, #tpu.memory_space<vmem>>, vector<1x8xf32>
    %69 = vector.broadcast %68 : vector<1x8xf32> to vector<16x8xf32>
    %70 = arith.addf %67, %69 : vector<16x8xf32>
    %c0_33 = arith.constant 0 : index
    %c0_34 = arith.constant 0 : index
    %71 = vector.load %arg11[%c0_33, %c0_34] : memref<16x8xf32, #tpu.memory_space<vmem>>, vector<16x8xf32>
    tpu.vector_store %arg11[%c0_33, %c0_34], %70 {strides = array<i32>} : memref<16x8xf32, #tpu.memory_space<vmem>>, vector<16x8xf32>,
    return
  }
  func.func @transform_0(%arg0: i32) -> (i32, i32) {
    %c0_i32 = arith.constant 0 : i32
    %c0_i32_0 = arith.constant 0 : i32
    %c0_i32_1 = arith.constant 0 : i32
    return %c0_i32, %c0_i32_0 : i32, i32
  }
  func.func @transform_1(%arg0: i32) -> (i32, i32) {
    %c0_i32 = arith.constant 0 : i32
    %c0_i32_0 = arith.constant 0 : i32
    %c0_i32_1 = arith.constant 0 : i32
    return %c0_i32, %c0_i32_0 : i32, i32
  }
  func.func @transform_2(%arg0: i32) -> (i32, i32) {
    %c0_i32 = arith.constant 0 : i32
    %c0_i32_0 = arith.constant 0 : i32
    %c0_i32_1 = arith.constant 0 : i32
    return %c0_i32, %c0_i32_0 : i32, i32
  }
  func.func @transform_3(%arg0: i32) -> (i32, i32) {
    %c0_i32 = arith.constant 0 : i32
    %c0_i32_0 = arith.constant 0 : i32
    %c0_i32_1 = arith.constant 0 : i32
    return %c0_i32, %c0_i32_0 : i32, i32
  }
  func.func @transform_4(%arg0: i32) -> (i32, i32) {
    %c0_i32 = arith.constant 0 : i32
    %c0_i32_0 = arith.constant 0 : i32
    %c0_i32_1 = arith.constant 0 : i32
    return %c0_i32, %c0_i32_0 : i32, i32
  }
  func.func @transform_5(%arg0: i32) -> (i32, i32) {
    %c0_i32 = arith.constant 0 : i32
    %c0_i32_0 = arith.constant 0 : i32
    %c0_i32_1 = arith.constant 0 : i32
    return %c0_i32, %c0_i32_0 : i32, i32
  }
  func.func @transform_6(%arg0: i32) -> (i32, i32) {
    %c0_i32 = arith.constant 0 : i32
    %c0_i32_0 = arith.constant 0 : i32
    %c0_i32_1 = arith.constant 0 : i32
    return %c0_i32, %c0_i32_0 : i32, i32
  }
  func.func @transform_7(%arg0: i32) -> (i32, i32) {
    %c0_i32 = arith.constant 0 : i32
    %c0_i32_0 = arith.constant 0 : i32
    %c0_i32_1 = arith.constant 0 : i32
    return %c0_i32, %c0_i32_0 : i32, i32
  }
  func.func @transform_8(%arg0: i32) -> (i32, i32) {
    %c0_i32 = arith.constant 0 : i32
    %c0_i32_0 = arith.constant 0 : i32
    %c0_i32_1 = arith.constant 0 : i32
    return %c0_i32, %c0_i32_0 : i32, i32
  }
  func.func @transform_9(%arg0: i32) -> (i32, i32) {
    %c0_i32 = arith.constant 0 : i32
    %c0_i32_0 = arith.constant 0 : i32
    %c0_i32_1 = arith.constant 0 : i32
    return %c0_i32, %c0_i32_0 : i32, i32
  }
  func.func @transform_10(%arg0: i32) -> (i32, i32) {
    %c0_i32 = arith.constant 0 : i32
    %c0_i32_0 = arith.constant 0 : i32
    %c0_i32_1 = arith.constant 0 : i32
    return %c0_i32, %c0_i32_0 : i32, i32
  }
}

</mosaic_0001>

<llo_original>
// kernel: tpu_custom_call.1
$region0: #{tpu_custom_call.1}
  #allocation0 [shape = 'u32[]', space=smem, size = 0x4, offset = 0x4, fixed_abs, tag = 'smem constant byte address 0x4 - core index']
  #allocation1 [shape = 'u32[144,128]{1,0:T(1,128)}', space=vmem, size = 0x12000, scoped, tag = 'internal scratch']
  %s0 = inlined_call_operand.vmem [shape: bf16[16,8], index: 0, kind: input, shape index: {}]
  %s1 = inlined_call_operand.vmem [shape: bf16[48,16], index: 1, kind: input, shape index: {}]
  %s2 = inlined_call_operand.vmem [shape: bf16[8,32], index: 2, kind: input, shape index: {}]
  %s3 = inlined_call_operand.vmem [shape: f32[1,32], index: 3, kind: input, shape index: {}]
  %s4 = inlined_call_operand.vmem [shape: bf16[96,32], index: 4, kind: input, shape index: {}]
  %s5 = inlined_call_operand.vmem [shape: f32[1,32], index: 5, kind: input, shape index: {}]
  %s6 = inlined_call_operand.vmem [shape: bf16[96,8], index: 6, kind: input, shape index: {}]
  %s7 = inlined_call_operand.vmem [shape: f32[1,8], index: 7, kind: input, shape index: {}]
  %s8 = inlined_call_operand.vmem [shape: bf16[24,8], index: 8, kind: input, shape index: {}]
  %s9 = inlined_call_operand.vmem [shape: f32[1,8], index: 9, kind: input, shape index: {}]
  %s10 = inlined_call_operand.vmem [shape: f32[16,8], index: 10, kind: output, shape index: {}]
  %s11 = sld [smem:[#allocation0]]
  $region50: #{tpu_custom_call.1} parent=0
    _
  %s13 = ssub.s32 1, %s11
  %s14 = scalar_select 0, %s13, %s11
  // Predicated region
  $region2: #{tpu_custom_call.1} parent=0 // pred_check
    _
  $region3: #{tpu_custom_call.1} parent=0 // pred_check_branch
    %16 = sbr.rel (0) target = $region5
  $region4: #{tpu_custom_call.1} parent=0 // pred_region
    _
  $region5: #{tpu_custom_call.1} parent=0 // pred_fallthru
    _
  // Predicated region
  $region6: #{tpu_custom_call.1} parent=0 // pred_check
    _
  $region7: #{tpu_custom_call.1} parent=0 // pred_check_branch
    %18 = sbr.rel (0) target = $region9
  $region8: #{tpu_custom_call.1} parent=0 // pred_region
    _
  $region9: #{tpu_custom_call.1} parent=0 // pred_fallthru
    _
  // Predicated region
  $region10: #{tpu_custom_call.1} parent=0 // pred_check
    _
  $region11: #{tpu_custom_call.1} parent=0 // pred_check_branch
    %20 = sbr.rel (0) target = $region13
  $region12: #{tpu_custom_call.1} parent=0 // pred_region
    _
  $region13: #{tpu_custom_call.1} parent=0 // pred_fallthru
    _
  // Predicated region
  $region14: #{tpu_custom_call.1} parent=0 // pred_check
    _
  $region15: #{tpu_custom_call.1} parent=0 // pred_check_branch
    %22 = sbr.rel (0) target = $region17
  $region16: #{tpu_custom_call.1} parent=0 // pred_region
    _
  $region17: #{tpu_custom_call.1} parent=0 // pred_fallthru
    _
  // Predicated region
  $region18: #{tpu_custom_call.1} parent=0 // pred_check
    _
  $region19: #{tpu_custom_call.1} parent=0 // pred_check_branch
    %24 = sbr.rel (0) target = $region21
  $region20: #{tpu_custom_call.1} parent=0 // pred_region
    _
  $region21: #{tpu_custom_call.1} parent=0 // pred_fallthru
    _
  // Predicated region
  $region22: #{tpu_custom_call.1} parent=0 // pred_check
    _
  $region23: #{tpu_custom_call.1} parent=0 // pred_check_branch
    %26 = sbr.rel (0) target = $region25
  $region24: #{tpu_custom_call.1} parent=0 // pred_region
    _
  $region25: #{tpu_custom_call.1} parent=0 // pred_fallthru
    _
  // Predicated region
  $region26: #{tpu_custom_call.1} parent=0 // pred_check
    _
  $region27: #{tpu_custom_call.1} parent=0 // pred_check_branch
    %28 = sbr.rel (0) target = $region29
  $region28: #{tpu_custom_call.1} parent=0 // pred_region
    _
  $region29: #{tpu_custom_call.1} parent=0 // pred_fallthru
    _
  // Predicated region
  $region30: #{tpu_custom_call.1} parent=0 // pred_check
    _
  $region31: #{tpu_custom_call.1} parent=0 // pred_check_branch
    %30 = sbr.rel (0) target = $region33
  $region32: #{tpu_custom_call.1} parent=0 // pred_region
    _
  $region33: #{tpu_custom_call.1} parent=0 // pred_fallthru
    _
  // Predicated region
  $region34: #{tpu_custom_call.1} parent=0 // pred_check
    _
  $region35: #{tpu_custom_call.1} parent=0 // pred_check_branch
    %32 = sbr.rel (0) target = $region37
  $region36: #{tpu_custom_call.1} parent=0 // pred_region
    _
  $region37: #{tpu_custom_call.1} parent=0 // pred_fallthru
    _
  // Predicated region
  $region38: #{tpu_custom_call.1} parent=0 // pred_check
    _
  $region39: #{tpu_custom_call.1} parent=0 // pred_check_branch
    %34 = sbr.rel (0) target = $region41
  $region40: #{tpu_custom_call.1} parent=0 // pred_region
    _
  $region41: #{tpu_custom_call.1} parent=0 // pred_fallthru
    _
  %v36 = vld [vmem:[%s1] sm:$0xf]
  %v37 = vld [vmem:[%s1 + $0x4] sm:$0xf]
  %v38 = vld [vmem:[%s1 + $0x8] sm:$0xf]
  %v39 = vld [vmem:[%s1 + $0xc] sm:$0xf]
  %v40 = vld [vmem:[%s1 + $0x10] sm:$0xf]
  %v41 = vld [vmem:[%s1 + $0x14] sm:$0xf]
  %v42 = vld [vmem:[%s0] sm:$0xf]
  %v43 = vld [vmem:[%s0 + $0x4] sm:$0xf]
  %v44 = vld [vmem:[%s2] sm:$0xf]
  %v47 = vunpack.c.l.b16 %v42
  %v48 = vunpack.c.l.b16 %v43
  %v49 = vpack.c.b16 %v48, %v47
  %vm50 = vcmask 64512
  %v52 = vsel %vm50, %v49, 0
  %vm54 = vcmask 1043456
  %v56 = vsel %vm54, %v44, 0
  %58 = vmatprep.subr.bf16.mxu0 0
  %59 = vmatpush1.bf16.msra.mxu0 %v56
  %60 = vmatprep.subr.bf16.mxu0 0
  %61 = vmatpush1.bf16.msra.mxu0 0
  %62 = vmatprep.subr.bf16.mxu0 0
  %63 = vmatpush1.bf16.msra.mxu0 0
  %64 = vmatprep.subr.bf16.mxu0 0
  %65 = vmatpush1.bf16.msra.mxu0 0
  %66 = vmatprep.subr.bf16.mxu0 0
  %67 = vmatpush1.bf16.msra.mxu0 0
  %68 = vmatprep.subr.bf16.mxu0 0
  %69 = vmatpush1.bf16.msra.mxu0 0
  %70 = vmatprep.subr.bf16.mxu0 0
  %71 = vmatpush1.bf16.msra.mxu0 0
  %72 = vmatprep.subr.bf16.mxu0 0
  %73 = vmatpush1.bf16.msra.mxu0 0
  %74 = vmatprep.subr.bf16.mxu0 0
  %75 = vmatpush1.bf16.msra.mxu0 0
  %76 = vmatprep.subr.bf16.mxu0 0
  %77 = vmatpush1.bf16.msra.mxu0 0
  %78 = vmatprep.subr.bf16.mxu0 0
  %79 = vmatpush1.bf16.msra.mxu0 0
  %80 = vmatprep.subr.bf16.mxu0 0
  %81 = vmatpush1.bf16.msra.mxu0 0
  %82 = vmatprep.subr.bf16.mxu0 0
  %83 = vmatpush1.bf16.msra.mxu0 0
  %84 = vmatprep.subr.bf16.mxu0 0
  %85 = vmatpush1.bf16.msra.mxu0 0
  %86 = vmatprep.subr.bf16.mxu0 0
  %87 = vmatpush1.bf16.msra.mxu0 0
  %88 = vmatprep.subr.bf16.mxu0 0
  %89 = vmatpush1.bf16.msra.mxu0 0
  %90 = vmatprep.mubr.bf16.mxu0 0
  %91 = vmatmul.mubr.bf16.gmra.mrb[0].mxu0 %v52
  %v92 = vpop.f32.mrb[0].mxu0
  %v93 = vadd.f32 0.0, %v92
  %v94 = vpop.f32.mrb[0].mxu0
  %v95 = vpop.f32.mrb[0].mxu0
  %v96 = vadd.f32 0.0, %v95
  %v97 = vpop.f32.mrb[0].mxu0
  %98 = vdwg.mxu0
  %v99 = vpack.c.bf16 %v96, %v93
  %v100 = vld [vmem:[%s3] sm:$0x1]
  %v102 = vlaneseq
  %v103 = vshrl.u32 %v102, 7
  %v104 = vsub.s32 0, %v103
  %v105 = vrot.slane %v100, %v104
  %v113 = vunpack.c.l.b16 %v36
  %v114 = vunpack.c.l.b16 %v37
  %v115 = vunpack.c.l.b16 %v38
  %v116 = vunpack.c.l.b16 %v39
  %v117 = vunpack.c.l.b16 %v40
  %v118 = vunpack.c.l.b16 %v41
  %v119 = vpack.c.b16 %v114, %v113
  %v120 = vpack.c.b16 %v116, %v115
  %v121 = vpack.c.b16 %v118, %v117
  %vm122 = vcmask 130048
  %v124 = vsel %vm122, %v119, 0
  %v127 = vsel %vm122, %v120, 0
  %v130 = vsel %vm122, %v121, 0
  %132 = vmatprep.subr.bf16.mxu0 0
  %133 = vmatpush1.bf16.msra.mxu0 %v99
  %134 = vmatprep.subr.bf16.mxu0 0
  %135 = vmatpush1.bf16.msra.mxu0 0
  %136 = vmatprep.subr.bf16.mxu0 0
  %137 = vmatpush1.bf16.msra.mxu0 0
  %138 = vmatprep.subr.bf16.mxu0 0
  %139 = vmatpush1.bf16.msra.mxu0 0
  %140 = vmatprep.subr.bf16.mxu0 0
  %141 = vmatpush1.bf16.msra.mxu0 0
  %142 = vmatprep.subr.bf16.mxu0 0
  %143 = vmatpush1.bf16.msra.mxu0 0
  %144 = vmatprep.subr.bf16.mxu0 0
  %145 = vmatpush1.bf16.msra.mxu0 0
  %146 = vmatprep.subr.bf16.mxu0 0
  %147 = vmatpush1.bf16.msra.mxu0 0
  %148 = vmatprep.subr.bf16.mxu0 0
  %149 = vmatpush1.bf16.msra.mxu0 0
  %150 = vmatprep.subr.bf16.mxu0 0
  %151 = vmatpush1.bf16.msra.mxu0 0
  %152 = vmatprep.subr.bf16.mxu0 0
  %153 = vmatpush1.bf16.msra.mxu0 0
  %154 = vmatprep.subr.bf16.mxu0 0
  %155 = vmatpush1.bf16.msra.mxu0 0
  %156 = vmatprep.subr.bf16.mxu0 0
  %157 = vmatpush1.bf16.msra.mxu0 0
  %158 = vmatprep.subr.bf16.mxu0 0
  %159 = vmatpush1.bf16.msra.mxu0 0
  %160 = vmatprep.subr.bf16.mxu0 0
  %161 = vmatpush1.bf16.msra.mxu0 0
  %162 = vmatprep.subr.bf16.mxu0 0
  %163 = vmatpush1.bf16.msra.mxu0 0
  %164 = vmatprep.mubr.bf16.mxu0 0
  %165 = vmatmul.mubr.bf16.gmra.mrb[0].mxu0 %v124
  %v166 = vpop.f32.mrb[0].mxu0
  %v167 = vadd.f32 %v105, %v166
  %v168 = vpop.f32.mrb[0].mxu0
  %v169 = vpop.f32.mrb[0].mxu0
  %v170 = vadd.f32 %v105, %v169
  %v171 = vpop.f32.mrb[0].mxu0
  %172 = vmatprep.mubr.bf16.mxu0 0
  %173 = vmatmul.mubr.bf16.gmra.mrb[0].mxu0 %v127
  %v174 = vpop.f32.mrb[0].mxu0
  %v175 = vadd.f32 %v105, %v174
  %v176 = vpop.f32.mrb[0].mxu0
  %v177 = vpop.f32.mrb[0].mxu0
  %v178 = vadd.f32 %v105, %v177
  %v179 = vpop.f32.mrb[0].mxu0
  %180 = vmatprep.mubr.bf16.mxu0 0
  %181 = vmatmul.mubr.bf16.gmra.mrb[0].mxu0 %v130
  %v182 = vpop.f32.mrb[0].mxu0
  %v183 = vadd.f32 %v105, %v182
  %v184 = vpop.f32.mrb[0].mxu0
  %v185 = vpop.f32.mrb[0].mxu0
  %v186 = vadd.f32 %v105, %v185
  %v187 = vpop.f32.mrb[0].mxu0
  %188 = vdwg.mxu0
  %v189 = vmax.f32 %v167, 0.0
  %v190 = vmax.f32 %v170, 0.0
  %v191 = vmax.f32 %v175, 0.0
  %v192 = vmax.f32 %v178, 0.0
  %v193 = vmax.f32 %v183, 0.0
  %v194 = vmax.f32 %v186, 0.0
  %v195 = vld [vmem:[%s4] sm:$0xf]
  %v196 = vld [vmem:[%s4 + $0x4] sm:$0xf]
  %v197 = vld [vmem:[%s4 + $0x8] sm:$0xf]
  %v198 = vld [vmem:[%s4 + $0xc] sm:$0xf]
  %v199 = vld [vmem:[%s4 + $0x10] sm:$0xf]
  %v200 = vld [vmem:[%s4 + $0x14] sm:$0xf]
  %v201 = vld [vmem:[%s4 + $0x18] sm:$0xf]
  %v202 = vld [vmem:[%s4 + $0x1c] sm:$0xf]
  %v203 = vld [vmem:[%s4 + $0x20] sm:$0xf]
  %v204 = vld [vmem:[%s4 + $0x24] sm:$0xf]
  %v205 = vld [vmem:[%s4 + $0x28] sm:$0xf]
  %v206 = vld [vmem:[%s4 + $0x2c] sm:$0xf]
  %v207 = vpack.c.bf16 %v190, %v189
  %v208 = vpack.c.bf16 %v192, %v191
  %v213 = vunpack.c.l.b16 %v199
  %v214 = vunpack.c.l.b16 %v200
  %v215 = vunpack.c.l.b16 %v201
  %v216 = vunpack.c.l.b16 %v202
  %v217 = vpack.c.b16 %v214, %v213
  %v218 = vpack.c.b16 %v216, %v215
  %vm221 = vcmask 261120
  %v223 = vsel %vm221, %v208, 0
  %225 = vmatprep.subr.bf16.mxu0 0
  %226 = vmatpush1.bf16.msra.mxu0 %v217
  %227 = vmatprep.subr.bf16.mxu0 0
  %228 = vmatpush1.bf16.msra.mxu0 %v218
  %229 = vmatprep.subr.bf16.mxu0 0
  %230 = vmatpush1.bf16.msra.mxu0 0
  %231 = vmatprep.subr.bf16.mxu0 0
  %232 = vmatpush1.bf16.msra.mxu0 0
  %233 = vmatprep.subr.bf16.mxu0 0
  %234 = vmatpush1.bf16.msra.mxu0 0
  %235 = vmatprep.subr.bf16.mxu0 0
  %236 = vmatpush1.bf16.msra.mxu0 0
  %237 = vmatprep.subr.bf16.mxu0 0
  %238 = vmatpush1.bf16.msra.mxu0 0
  %239 = vmatprep.subr.bf16.mxu0 0
  %240 = vmatpush1.bf16.msra.mxu0 0
  %241 = vmatprep.subr.bf16.mxu0 0
  %242 = vmatpush1.bf16.msra.mxu0 0
  %243 = vmatprep.subr.bf16.mxu0 0
  %244 = vmatpush1.bf16.msra.mxu0 0
  %245 = vmatprep.subr.bf16.mxu0 0
  %246 = vmatpush1.bf16.msra.mxu0 0
  %247 = vmatprep.subr.bf16.mxu0 0
  %248 = vmatpush1.bf16.msra.mxu0 0
  %249 = vmatprep.subr.bf16.mxu0 0
  %250 = vmatpush1.bf16.msra.mxu0 0
  %251 = vmatprep.subr.bf16.mxu0 0
  %252 = vmatpush1.bf16.msra.mxu0 0
  %253 = vmatprep.subr.bf16.mxu0 0
  %254 = vmatpush1.bf16.msra.mxu0 0
  %255 = vmatprep.subr.bf16.mxu0 0
  %256 = vmatpush1.bf16.msra.mxu0 0
  %257 = vmatprep.mubr.bf16.mxu0 0
  %258 = vmatmul.mubr.bf16.gmra.mrb[0].mxu0 %v223
  %v259 = vpop.f32.mrb[0].mxu0
  %v260 = vadd.f32 0.0, %v259
  %v261 = vpop.f32.mrb[0].mxu0
  %v262 = vpop.f32.mrb[0].mxu0
  %v263 = vadd.f32 0.0, %v262
  %v264 = vpop.f32.mrb[0].mxu0
  %265 = vdwg.mxu0
  %v270 = vunpack.c.l.b16 %v195
  %v271 = vunpack.c.l.b16 %v196
  %v272 = vunpack.c.l.b16 %v197
  %v273 = vunpack.c.l.b16 %v198
  %v274 = vpack.c.b16 %v271, %v270
  %v275 = vpack.c.b16 %v273, %v272
  %v279 = vsel %vm221, %v207, 0
  %281 = vmatprep.subr.bf16.mxu0 0
  %282 = vmatpush1.bf16.msra.mxu0 %v274
  %283 = vmatprep.subr.bf16.mxu0 0
  %284 = vmatpush1.bf16.msra.mxu0 %v275
  %285 = vmatprep.subr.bf16.mxu0 0
  %286 = vmatpush1.bf16.msra.mxu0 0
  %287 = vmatprep.subr.bf16.mxu0 0
  %288 = vmatpush1.bf16.msra.mxu0 0
  %289 = vmatprep.subr.bf16.mxu0 0
  %290 = vmatpush1.bf16.msra.mxu0 0
  %291 = vmatprep.subr.bf16.mxu0 0
  %292 = vmatpush1.bf16.msra.mxu0 0
  %293 = vmatprep.subr.bf16.mxu0 0
  %294 = vmatpush1.bf16.msra.mxu0 0
  %295 = vmatprep.subr.bf16.mxu0 0
  %296 = vmatpush1.bf16.msra.mxu0 0
  %297 = vmatprep.subr.bf16.mxu0 0
  %298 = vmatpush1.bf16.msra.mxu0 0
  %299 = vmatprep.subr.bf16.mxu0 0
  %300 = vmatpush1.bf16.msra.mxu0 0
  %301 = vmatprep.subr.bf16.mxu0 0
  %302 = vmatpush1.bf16.msra.mxu0 0
  %303 = vmatprep.subr.bf16.mxu0 0
  %304 = vmatpush1.bf16.msra.mxu0 0
  %305 = vmatprep.subr.bf16.mxu0 0
  %306 = vmatpush1.bf16.msra.mxu0 0
  %307 = vmatprep.subr.bf16.mxu0 0
  %308 = vmatpush1.bf16.msra.mxu0 0
  %309 = vmatprep.subr.bf16.mxu0 0
  %310 = vmatpush1.bf16.msra.mxu0 0
  %311 = vmatprep.subr.bf16.mxu0 0
  %312 = vmatpush1.bf16.msra.mxu0 0
  %313 = vmatprep.mubr.bf16.mxu0 0
  %314 = vmatmul.mubr.bf16.gmra.mrb[0].mxu0 %v279
  %v315 = vpop.f32.mrb[0].mxu0
  %v316 = vadd.f32 %v260, %v315
  %v317 = vpop.f32.mrb[0].mxu0
  %v318 = vpop.f32.mrb[0].mxu0
  %v319 = vadd.f32 %v263, %v318
  %v320 = vpop.f32.mrb[0].mxu0
  %321 = vdwg.mxu0
  %v322 = vpack.c.bf16 %v194, %v193
  %v327 = vunpack.c.l.b16 %v203
  %v328 = vunpack.c.l.b16 %v204
  %v329 = vunpack.c.l.b16 %v205
  %v330 = vunpack.c.l.b16 %v206
  %v331 = vpack.c.b16 %v328, %v327
  %v332 = vpack.c.b16 %v330, %v329
  %v336 = vsel %vm221, %v322, 0
  %338 = vmatprep.subr.bf16.mxu0 0
  %339 = vmatpush1.bf16.msra.mxu0 %v331
  %340 = vmatprep.subr.bf16.mxu0 0
  %341 = vmatpush1.bf16.msra.mxu0 %v332
  %342 = vmatprep.subr.bf16.mxu0 0
  %343 = vmatpush1.bf16.msra.mxu0 0
  %344 = vmatprep.subr.bf16.mxu0 0
  %345 = vmatpush1.bf16.msra.mxu0 0
  %346 = vmatprep.subr.bf16.mxu0 0
  %347 = vmatpush1.bf16.msra.mxu0 0
  %348 = vmatprep.subr.bf16.mxu0 0
  %349 = vmatpush1.bf16.msra.mxu0 0
  %350 = vmatprep.subr.bf16.mxu0 0
  %351 = vmatpush1.bf16.msra.mxu0 0
  %352 = vmatprep.subr.bf16.mxu0 0
  %353 = vmatpush1.bf16.msra.mxu0 0
  %354 = vmatprep.subr.bf16.mxu0 0
  %355 = vmatpush1.bf16.msra.mxu0 0
  %356 = vmatprep.subr.bf16.mxu0 0
  %357 = vmatpush1.bf16.msra.mxu0 0
  %358 = vmatprep.subr.bf16.mxu0 0
  %359 = vmatpush1.bf16.msra.mxu0 0
  %360 = vmatprep.subr.bf16.mxu0 0
  %361 = vmatpush1.bf16.msra.mxu0 0
  %362 = vmatprep.subr.bf16.mxu0 0
  %363 = vmatpush1.bf16.msra.mxu0 0
  %364 = vmatprep.subr.bf16.mxu0 0
  %365 = vmatpush1.bf16.msra.mxu0 0
  %366 = vmatprep.subr.bf16.mxu0 0
  %367 = vmatpush1.bf16.msra.mxu0 0
  %368 = vmatprep.subr.bf16.mxu0 0
  %369 = vmatpush1.bf16.msra.mxu0 0
  %370 = vmatprep.mubr.bf16.mxu0 0
  %371 = vmatmul.mubr.bf16.gmra.mrb[0].mxu0 %v336
  %v372 = vpop.f32.mrb[0].mxu0
  %v373 = vadd.f32 0.0, %v372
  %v374 = vpop.f32.mrb[0].mxu0
  %v375 = vpop.f32.mrb[0].mxu0
  %v376 = vadd.f32 0.0, %v375
  %v377 = vpop.f32.mrb[0].mxu0
  %378 = vdwg.mxu0
  %v379 = vadd.f32 %v316, %v373
  %v380 = vadd.f32 %v319, %v376
  %v381 = vpack.c.bf16 %v380, %v379
  %v382 = vld [vmem:[%s5] sm:$0x1]
  %v384 = vlaneseq
  %v385 = vshrl.u32 %v384, 7
  %v386 = vsub.s32 0, %v385
  %v387 = vrot.slane %v382, %v386
  %389 = vmatprep.subr.bf16.mxu0 0
  %390 = vmatpush1.bf16.msra.mxu0 %v381
  %391 = vmatprep.subr.bf16.mxu0 0
  %392 = vmatpush1.bf16.msra.mxu0 0
  %393 = vmatprep.subr.bf16.mxu0 0
  %394 = vmatpush1.bf16.msra.mxu0 0
  %395 = vmatprep.subr.bf16.mxu0 0
  %396 = vmatpush1.bf16.msra.mxu0 0
  %397 = vmatprep.subr.bf16.mxu0 0
  %398 = vmatpush1.bf16.msra.mxu0 0
  %399 = vmatprep.subr.bf16.mxu0 0
  %400 = vmatpush1.bf16.msra.mxu0 0
  %401 = vmatprep.subr.bf16.mxu0 0
  %402 = vmatpush1.bf16.msra.mxu0 0
  %403 = vmatprep.subr.bf16.mxu0 0
  %404 = vmatpush1.bf16.msra.mxu0 0
  %405 = vmatprep.subr.bf16.mxu0 0
  %406 = vmatpush1.bf16.msra.mxu0 0
  %407 = vmatprep.subr.bf16.mxu0 0
  %408 = vmatpush1.bf16.msra.mxu0 0
  %409 = vmatprep.subr.bf16.mxu0 0
  %410 = vmatpush1.bf16.msra.mxu0 0
  %411 = vmatprep.subr.bf16.mxu0 0
  %412 = vmatpush1.bf16.msra.mxu0 0
  %413 = vmatprep.subr.bf16.mxu0 0
  %414 = vmatpush1.bf16.msra.mxu0 0
  %415 = vmatprep.subr.bf16.mxu0 0
  %416 = vmatpush1.bf16.msra.mxu0 0
  %417 = vmatprep.subr.bf16.mxu0 0
  %418 = vmatpush1.bf16.msra.mxu0 0
  %419 = vmatprep.subr.bf16.mxu0 0
  %420 = vmatpush1.bf16.msra.mxu0 0
  %421 = vmatprep.mubr.bf16.mxu0 0
  %422 = vmatmul.mubr.bf16.gmra.mrb[0].mxu0 %v124
  %v423 = vpop.f32.mrb[0].mxu0
  %v424 = vadd.f32 %v387, %v423
  %v425 = vpop.f32.mrb[0].mxu0
  %v426 = vpop.f32.mrb[0].mxu0
  %v427 = vadd.f32 %v387, %v426
  %v428 = vpop.f32.mrb[0].mxu0
  %429 = vmatprep.mubr.bf16.mxu0 0
  %430 = vmatmul.mubr.bf16.gmra.mrb[0].mxu0 %v127
  %v431 = vpop.f32.mrb[0].mxu0
  %v432 = vadd.f32 %v387, %v431
  %v433 = vpop.f32.mrb[0].mxu0
  %v434 = vpop.f32.mrb[0].mxu0
  %v435 = vadd.f32 %v387, %v434
  %v436 = vpop.f32.mrb[0].mxu0
  %437 = vmatprep.mubr.bf16.mxu0 0
  %438 = vmatmul.mubr.bf16.gmra.mrb[0].mxu0 %v130
  %v439 = vpop.f32.mrb[0].mxu0
  %v440 = vadd.f32 %v387, %v439
  %v441 = vpop.f32.mrb[0].mxu0
  %v442 = vpop.f32.mrb[0].mxu0
  %v443 = vadd.f32 %v387, %v442
  %v444 = vpop.f32.mrb[0].mxu0
  %445 = vdwg.mxu0
  %v446 = vmax.f32 %v424, 0.0
  %v447 = vmax.f32 %v427, 0.0
  %v448 = vmax.f32 %v432, 0.0
  %v449 = vmax.f32 %v435, 0.0
  %v450 = vmax.f32 %v440, 0.0
  %v451 = vmax.f32 %v443, 0.0
  %v452 = vld [vmem:[%s6] sm:$0xf]
  %v453 = vld [vmem:[%s6 + $0x4] sm:$0xf]
  %v454 = vld [vmem:[%s6 + $0x8] sm:$0xf]
  %v455 = vld [vmem:[%s6 + $0xc] sm:$0xf]
  %v456 = vld [vmem:[%s6 + $0x10] sm:$0xf]
  %v457 = vld [vmem:[%s6 + $0x14] sm:$0xf]
  %v458 = vld [vmem:[%s6 + $0x18] sm:$0xf]
  %v459 = vld [vmem:[%s6 + $0x1c] sm:$0xf]
  %v460 = vld [vmem:[%s6 + $0x20] sm:$0xf]
  %v461 = vld [vmem:[%s6 + $0x24] sm:$0xf]
  %v462 = vld [vmem:[%s6 + $0x28] sm:$0xf]
  %v463 = vld [vmem:[%s6 + $0x2c] sm:$0xf]
  %v464 = vpack.c.bf16 %v447, %v446
  %v465 = vpack.c.bf16 %v449, %v448
  %v470 = vunpack.c.l.b16 %v456
  %v471 = vunpack.c.l.b16 %v457
  %v472 = vunpack.c.l.b16 %v458
  %v473 = vunpack.c.l.b16 %v459
  %v474 = vpack.c.b16 %v471, %v470
  %v475 = vpack.c.b16 %v473, %v472
  %v479 = vsel %vm221, %v465, 0
  %481 = vmatprep.subr.bf16.mxu0 0
  %482 = vmatpush1.bf16.msra.mxu0 %v474
  %483 = vmatprep.subr.bf16.mxu0 0
  %484 = vmatpush1.bf16.msra.mxu0 %v475
  %485 = vmatprep.subr.bf16.mxu0 0
  %486 = vmatpush1.bf16.msra.mxu0 0
  %487 = vmatprep.subr.bf16.mxu0 0
  %488 = vmatpush1.bf16.msra.mxu0 0
  %489 = vmatprep.subr.bf16.mxu0 0
  %490 = vmatpush1.bf16.msra.mxu0 0
  %491 = vmatprep.subr.bf16.mxu0 0
  %492 = vmatpush1.bf16.msra.mxu0 0
  %493 = vmatprep.subr.bf16.mxu0 0
  %494 = vmatpush1.bf16.msra.mxu0 0
  %495 = vmatprep.subr.bf16.mxu0 0
  %496 = vmatpush1.bf16.msra.mxu0 0
  %497 = vmatprep.subr.bf16.mxu0 0
  %498 = vmatpush1.bf16.msra.mxu0 0
  %499 = vmatprep.subr.bf16.mxu0 0
  %500 = vmatpush1.bf16.msra.mxu0 0
  %501 = vmatprep.subr.bf16.mxu0 0
  %502 = vmatpush1.bf16.msra.mxu0 0
  %503 = vmatprep.subr.bf16.mxu0 0
  %504 = vmatpush1.bf16.msra.mxu0 0
  %505 = vmatprep.subr.bf16.mxu0 0
  %506 = vmatpush1.bf16.msra.mxu0 0
  %507 = vmatprep.subr.bf16.mxu0 0
  %508 = vmatpush1.bf16.msra.mxu0 0
  %509 = vmatprep.subr.bf16.mxu0 0
  %510 = vmatpush1.bf16.msra.mxu0 0
  %511 = vmatprep.subr.bf16.mxu0 0
  %512 = vmatpush1.bf16.msra.mxu0 0
  %513 = vmatprep.mubr.bf16.mxu0 0
  %514 = vmatmul.mubr.bf16.gmra.mrb[0].mxu0 %v479
  %v515 = vpop.f32.mrb[0].mxu0
  %v516 = vadd.f32 0.0, %v515
  %v517 = vpop.f32.mrb[0].mxu0
  %v518 = vpop.f32.mrb[0].mxu0
  %v519 = vadd.f32 0.0, %v518
  %v520 = vpop.f32.mrb[0].mxu0
  %521 = vdwg.mxu0
  %v526 = vunpack.c.l.b16 %v452
  %v527 = vunpack.c.l.b16 %v453
  %v528 = vunpack.c.l.b16 %v454
  %v529 = vunpack.c.l.b16 %v455
  %v530 = vpack.c.b16 %v527, %v526
  %v531 = vpack.c.b16 %v529, %v528
  %v535 = vsel %vm221, %v464, 0
  %537 = vmatprep.subr.bf16.mxu0 0
  %538 = vmatpush1.bf16.msra.mxu0 %v530
  %539 = vmatprep.subr.bf16.mxu0 0
  %540 = vmatpush1.bf16.msra.mxu0 %v531
  %541 = vmatprep.subr.bf16.mxu0 0
  %542 = vmatpush1.bf16.msra.mxu0 0
  %543 = vmatprep.subr.bf16.mxu0 0
  %544 = vmatpush1.bf16.msra.mxu0 0
  %545 = vmatprep.subr.bf16.mxu0 0
  %546 = vmatpush1.bf16.msra.mxu0 0
  %547 = vmatprep.subr.bf16.mxu0 0
  %548 = vmatpush1.bf16.msra.mxu0 0
  %549 = vmatprep.subr.bf16.mxu0 0
  %550 = vmatpush1.bf16.msra.mxu0 0
  %551 = vmatprep.subr.bf16.mxu0 0
  %552 = vmatpush1.bf16.msra.mxu0 0
  %553 = vmatprep.subr.bf16.mxu0 0
  %554 = vmatpush1.bf16.msra.mxu0 0
  %555 = vmatprep.subr.bf16.mxu0 0
  %556 = vmatpush1.bf16.msra.mxu0 0
  %557 = vmatprep.subr.bf16.mxu0 0
  %558 = vmatpush1.bf16.msra.mxu0 0
  %559 = vmatprep.subr.bf16.mxu0 0
  %560 = vmatpush1.bf16.msra.mxu0 0
  %561 = vmatprep.subr.bf16.mxu0 0
  %562 = vmatpush1.bf16.msra.mxu0 0
  %563 = vmatprep.subr.bf16.mxu0 0
  %564 = vmatpush1.bf16.msra.mxu0 0
  %565 = vmatprep.subr.bf16.mxu0 0
  %566 = vmatpush1.bf16.msra.mxu0 0
  %567 = vmatprep.subr.bf16.mxu0 0
  %568 = vmatpush1.bf16.msra.mxu0 0
  %569 = vmatprep.mubr.bf16.mxu0 0
  %570 = vmatmul.mubr.bf16.gmra.mrb[0].mxu0 %v535
  %v571 = vpop.f32.mrb[0].mxu0
  %v572 = vadd.f32 %v516, %v571
  %v573 = vpop.f32.mrb[0].mxu0
  %v574 = vpop.f32.mrb[0].mxu0
  %v575 = vadd.f32 %v519, %v574
  %v576 = vpop.f32.mrb[0].mxu0
  %577 = vdwg.mxu0
  %v578 = vpack.c.bf16 %v451, %v450
  %v583 = vunpack.c.l.b16 %v460
  %v584 = vunpack.c.l.b16 %v461
  %v585 = vunpack.c.l.b16 %v462
  %v586 = vunpack.c.l.b16 %v463
  %v587 = vpack.c.b16 %v584, %v583
  %v588 = vpack.c.b16 %v586, %v585
  %v592 = vsel %vm221, %v578, 0
  %594 = vmatprep.subr.bf16.mxu0 0
  %595 = vmatpush1.bf16.msra.mxu0 %v587
  %596 = vmatprep.subr.bf16.mxu0 0
  %597 = vmatpush1.bf16.msra.mxu0 %v588
  %598 = vmatprep.subr.bf16.mxu0 0
  %599 = vmatpush1.bf16.msra.mxu0 0
  %600 = vmatprep.subr.bf16.mxu0 0
  %601 = vmatpush1.bf16.msra.mxu0 0
  %602 = vmatprep.subr.bf16.mxu0 0
  %603 = vmatpush1.bf16.msra.mxu0 0
  %604 = vmatprep.subr.bf16.mxu0 0
  %605 = vmatpush1.bf16.msra.mxu0 0
  %606 = vmatprep.subr.bf16.mxu0 0
  %607 = vmatpush1.bf16.msra.mxu0 0
  %608 = vmatprep.subr.bf16.mxu0 0
  %609 = vmatpush1.bf16.msra.mxu0 0
  %610 = vmatprep.subr.bf16.mxu0 0
  %611 = vmatpush1.bf16.msra.mxu0 0
  %612 = vmatprep.subr.bf16.mxu0 0
  %613 = vmatpush1.bf16.msra.mxu0 0
  %614 = vmatprep.subr.bf16.mxu0 0
  %615 = vmatpush1.bf16.msra.mxu0 0
  %616 = vmatprep.subr.bf16.mxu0 0
  %617 = vmatpush1.bf16.msra.mxu0 0
  %618 = vmatprep.subr.bf16.mxu0 0
  %619 = vmatpush1.bf16.msra.mxu0 0
  %620 = vmatprep.subr.bf16.mxu0 0
  %621 = vmatpush1.bf16.msra.mxu0 0
  %622 = vmatprep.subr.bf16.mxu0 0
  %623 = vmatpush1.bf16.msra.mxu0 0
  %624 = vmatprep.subr.bf16.mxu0 0
  %625 = vmatpush1.bf16.msra.mxu0 0
  %626 = vmatprep.mubr.bf16.mxu0 0
  %627 = vmatmul.mubr.bf16.gmra.mrb[0].mxu0 %v592
  %v628 = vpop.f32.mrb[0].mxu0
  %v629 = vadd.f32 0.0, %v628
  %v630 = vpop.f32.mrb[0].mxu0
  %v631 = vpop.f32.mrb[0].mxu0
  %v632 = vadd.f32 0.0, %v631
  %v633 = vpop.f32.mrb[0].mxu0
  %634 = vdwg.mxu0
  %v635 = vadd.f32 %v572, %v629
  %v636 = vadd.f32 %v575, %v632
  %v637 = vpack.c.bf16 %v636, %v635
  %v638 = vld [vmem:[%s7] sm:$0x1]
  %v640 = vlaneseq
  %v641 = vshrl.u32 %v640, 7
  %v642 = vsub.s32 0, %v641
  %v643 = vrot.slane %v638, %v642
  %645 = vmatprep.subr.bf16.mxu0 0
  %646 = vmatpush1.bf16.msra.mxu0 %v637
  %647 = vmatprep.subr.bf16.mxu0 0
  %648 = vmatpush1.bf16.msra.mxu0 0
  %649 = vmatprep.subr.bf16.mxu0 0
  %650 = vmatpush1.bf16.msra.mxu0 0
  %651 = vmatprep.subr.bf16.mxu0 0
  %652 = vmatpush1.bf16.msra.mxu0 0
  %653 = vmatprep.subr.bf16.mxu0 0
  %654 = vmatpush1.bf16.msra.mxu0 0
  %655 = vmatprep.subr.bf16.mxu0 0
  %656 = vmatpush1.bf16.msra.mxu0 0
  %657 = vmatprep.subr.bf16.mxu0 0
  %658 = vmatpush1.bf16.msra.mxu0 0
  %659 = vmatprep.subr.bf16.mxu0 0
  %660 = vmatpush1.bf16.msra.mxu0 0
  %661 = vmatprep.subr.bf16.mxu0 0
  %662 = vmatpush1.bf16.msra.mxu0 0
  %663 = vmatprep.subr.bf16.mxu0 0
  %664 = vmatpush1.bf16.msra.mxu0 0
  %665 = vmatprep.subr.bf16.mxu0 0
  %666 = vmatpush1.bf16.msra.mxu0 0
  %667 = vmatprep.subr.bf16.mxu0 0
  %668 = vmatpush1.bf16.msra.mxu0 0
  %669 = vmatprep.subr.bf16.mxu0 0
  %670 = vmatpush1.bf16.msra.mxu0 0
  %671 = vmatprep.subr.bf16.mxu0 0
  %672 = vmatpush1.bf16.msra.mxu0 0
  %673 = vmatprep.subr.bf16.mxu0 0
  %674 = vmatpush1.bf16.msra.mxu0 0
  %675 = vmatprep.subr.bf16.mxu0 0
  %676 = vmatpush1.bf16.msra.mxu0 0
  %677 = vmatprep.mubr.bf16.mxu0 0
  %678 = vmatmul.mubr.bf16.gmra.mrb[0].mxu0 %v124
  %v679 = vpop.f32.mrb[0].mxu0
  %v680 = vadd.f32 %v643, %v679
  %v681 = vpop.f32.mrb[0].mxu0
  %v682 = vpop.f32.mrb[0].mxu0
  %v683 = vadd.f32 %v643, %v682
  %v684 = vpop.f32.mrb[0].mxu0
  %685 = vmatprep.mubr.bf16.mxu0 0
  %686 = vmatmul.mubr.bf16.gmra.mrb[0].mxu0 %v127
  %v687 = vpop.f32.mrb[0].mxu0
  %v688 = vadd.f32 %v643, %v687
  %v689 = vpop.f32.mrb[0].mxu0
  %v690 = vpop.f32.mrb[0].mxu0
  %v691 = vadd.f32 %v643, %v690
  %v692 = vpop.f32.mrb[0].mxu0
  %693 = vmatprep.mubr.bf16.mxu0 0
  %694 = vmatmul.mubr.bf16.gmra.mrb[0].mxu0 %v130
  %v695 = vpop.f32.mrb[0].mxu0
  %v696 = vadd.f32 %v643, %v695
  %v697 = vpop.f32.mrb[0].mxu0
  %v698 = vpop.f32.mrb[0].mxu0
  %v699 = vadd.f32 %v643, %v698
  %v700 = vpop.f32.mrb[0].mxu0
  %701 = vdwg.mxu0
  %v702 = vld [vmem:[%s8] sm:$0xf]
  %v703 = vld [vmem:[%s8 + $0x4] sm:$0xf]
  %v704 = vld [vmem:[%s8 + $0x8] sm:$0xf]
  %v705 = vpack.c.bf16 %v683, %v680
  %v706 = vpack.c.bf16 %v691, %v688
  %v708 = vsel %vm50, %v706, 0
  %v711 = vsel %vm54, %v703, 0
  %713 = vmatprep.subr.bf16.mxu0 0
  %714 = vmatpush1.bf16.msra.mxu0 %v711
  %715 = vmatprep.subr.bf16.mxu0 0
  %716 = vmatpush1.bf16.msra.mxu0 0
  %717 = vmatprep.subr.bf16.mxu0 0
  %718 = vmatpush1.bf16.msra.mxu0 0
  %719 = vmatprep.subr.bf16.mxu0 0
  %720 = vmatpush1.bf16.msra.mxu0 0
  %721 = vmatprep.subr.bf16.mxu0 0
  %722 = vmatpush1.bf16.msra.mxu0 0
  %723 = vmatprep.subr.bf16.mxu0 0
  %724 = vmatpush1.bf16.msra.mxu0 0
  %725 = vmatprep.subr.bf16.mxu0 0
  %726 = vmatpush1.bf16.msra.mxu0 0
  %727 = vmatprep.subr.bf16.mxu0 0
  %728 = vmatpush1.bf16.msra.mxu0 0
  %729 = vmatprep.subr.bf16.mxu0 0
  %730 = vmatpush1.bf16.msra.mxu0 0
  %731 = vmatprep.subr.bf16.mxu0 0
  %732 = vmatpush1.bf16.msra.mxu0 0
  %733 = vmatprep.subr.bf16.mxu0 0
  %734 = vmatpush1.bf16.msra.mxu0 0
  %735 = vmatprep.subr.bf16.mxu0 0
  %736 = vmatpush1.bf16.msra.mxu0 0
  %737 = vmatprep.subr.bf16.mxu0 0
  %738 = vmatpush1.bf16.msra.mxu0 0
  %739 = vmatprep.subr.bf16.mxu0 0
  %740 = vmatpush1.bf16.msra.mxu0 0
  %741 = vmatprep.subr.bf16.mxu0 0
  %742 = vmatpush1.bf16.msra.mxu0 0
  %743 = vmatprep.subr.bf16.mxu0 0
  %744 = vmatpush1.bf16.msra.mxu0 0
  %745 = vmatprep.mubr.bf16.mxu0 0
  %746 = vmatmul.mubr.bf16.gmra.mrb[0].mxu0 %v708
  %v747 = vpop.f32.mrb[0].mxu0
  %v748 = vadd.f32 0.0, %v747
  %v749 = vpop.f32.mrb[0].mxu0
  %v750 = vpop.f32.mrb[0].mxu0
  %v751 = vadd.f32 0.0, %v750
  %v752 = vpop.f32.mrb[0].mxu0
  %753 = vdwg.mxu0
  %v755 = vsel %vm50, %v705, 0
  %v758 = vsel %vm54, %v702, 0
  %760 = vmatprep.subr.bf16.mxu0 0
  %761 = vmatpush1.bf16.msra.mxu0 %v758
  %762 = vmatprep.subr.bf16.mxu0 0
  %763 = vmatpush1.bf16.msra.mxu0 0
  %764 = vmatprep.subr.bf16.mxu0 0
  %765 = vmatpush1.bf16.msra.mxu0 0
  %766 = vmatprep.subr.bf16.mxu0 0
  %767 = vmatpush1.bf16.msra.mxu0 0
  %768 = vmatprep.subr.bf16.mxu0 0
  %769 = vmatpush1.bf16.msra.mxu0 0
  %770 = vmatprep.subr.bf16.mxu0 0
  %771 = vmatpush1.bf16.msra.mxu0 0
  %772 = vmatprep.subr.bf16.mxu0 0
  %773 = vmatpush1.bf16.msra.mxu0 0
  %774 = vmatprep.subr.bf16.mxu0 0
  %775 = vmatpush1.bf16.msra.mxu0 0
  %776 = vmatprep.subr.bf16.mxu0 0
  %777 = vmatpush1.bf16.msra.mxu0 0
  %778 = vmatprep.subr.bf16.mxu0 0
  %779 = vmatpush1.bf16.msra.mxu0 0
  %780 = vmatprep.subr.bf16.mxu0 0
  %781 = vmatpush1.bf16.msra.mxu0 0
  %782 = vmatprep.subr.bf16.mxu0 0
  %783 = vmatpush1.bf16.msra.mxu0 0
  %784 = vmatprep.subr.bf16.mxu0 0
  %785 = vmatpush1.bf16.msra.mxu0 0
  %786 = vmatprep.subr.bf16.mxu0 0
  %787 = vmatpush1.bf16.msra.mxu0 0
  %788 = vmatprep.subr.bf16.mxu0 0
  %789 = vmatpush1.bf16.msra.mxu0 0
  %790 = vmatprep.subr.bf16.mxu0 0
  %791 = vmatpush1.bf16.msra.mxu0 0
  %792 = vmatprep.mubr.bf16.mxu0 0
  %793 = vmatmul.mubr.bf16.gmra.mrb[0].mxu0 %v755
  %v794 = vpop.f32.mrb[0].mxu0
  %v795 = vadd.f32 %v748, %v794
  %v796 = vpop.f32.mrb[0].mxu0
  %v797 = vpop.f32.mrb[0].mxu0
  %v798 = vadd.f32 %v751, %v797
  %v799 = vpop.f32.mrb[0].mxu0
  %800 = vdwg.mxu0
  %v801 = vpack.c.bf16 %v699, %v696
  %v803 = vsel %vm50, %v801, 0
  %v806 = vsel %vm54, %v704, 0
  %808 = vmatprep.subr.bf16.mxu0 0
  %809 = vmatpush1.bf16.msra.mxu0 %v806
  %810 = vmatprep.subr.bf16.mxu0 0
  %811 = vmatpush1.bf16.msra.mxu0 0
  %812 = vmatprep.subr.bf16.mxu0 0
  %813 = vmatpush1.bf16.msra.mxu0 0
  %814 = vmatprep.subr.bf16.mxu0 0
  %815 = vmatpush1.bf16.msra.mxu0 0
  %816 = vmatprep.subr.bf16.mxu0 0
  %817 = vmatpush1.bf16.msra.mxu0 0
  %818 = vmatprep.subr.bf16.mxu0 0
  %819 = vmatpush1.bf16.msra.mxu0 0
  %820 = vmatprep.subr.bf16.mxu0 0
  %821 = vmatpush1.bf16.msra.mxu0 0
  %822 = vmatprep.subr.bf16.mxu0 0
  %823 = vmatpush1.bf16.msra.mxu0 0
  %824 = vmatprep.subr.bf16.mxu0 0
  %825 = vmatpush1.bf16.msra.mxu0 0
  %826 = vmatprep.subr.bf16.mxu0 0
  %827 = vmatpush1.bf16.msra.mxu0 0
  %828 = vmatprep.subr.bf16.mxu0 0
  %829 = vmatpush1.bf16.msra.mxu0 0
  %830 = vmatprep.subr.bf16.mxu0 0
  %831 = vmatpush1.bf16.msra.mxu0 0
  %832 = vmatprep.subr.bf16.mxu0 0
  %833 = vmatpush1.bf16.msra.mxu0 0
  %834 = vmatprep.subr.bf16.mxu0 0
  %835 = vmatpush1.bf16.msra.mxu0 0
  %836 = vmatprep.subr.bf16.mxu0 0
  %837 = vmatpush1.bf16.msra.mxu0 0
  %838 = vmatprep.subr.bf16.mxu0 0
  %839 = vmatpush1.bf16.msra.mxu0 0
  %840 = vmatprep.mubr.bf16.mxu0 0
  %841 = vmatmul.mubr.bf16.gmra.mrb[0].mxu0 %v803
  %v842 = vpop.f32.mrb[0].mxu0
  %v843 = vadd.f32 0.0, %v842
  %v844 = vpop.f32.mrb[0].mxu0
  %v845 = vpop.f32.mrb[0].mxu0
  %v846 = vadd.f32 0.0, %v845
  %v847 = vpop.f32.mrb[0].mxu0
  %848 = vdwg.mxu0
  %v849 = vadd.f32 %v795, %v843
  %v850 = vadd.f32 %v798, %v846
  %v851 = vld [vmem:[%s9] sm:$0x1]
  %v853 = vlaneseq
  %v854 = vshrl.u32 %v853, 7
  %v855 = vsub.s32 0, %v854
  %v856 = vrot.slane %v851, %v855
  %v858 = vadd.f32 %v849, %v856
  %v859 = vadd.f32 %v850, %v856
  %860 = vst.msk [vmem:[%s10] sm:$0xff] %vm50, %v858
  %861 = vst.msk [vmem:[%s10 + $0x8] sm:$0xff] %vm50, %v859
  // Predicated region
  $region42: #{tpu_custom_call.1} parent=0 // pred_check
    _
  $region43: #{tpu_custom_call.1} parent=0 // pred_check_branch
    %863 = sbr.rel (0) target = $region45
  $region44: #{tpu_custom_call.1} parent=0 // pred_region
    _
  $region45: #{tpu_custom_call.1} parent=0 // pred_fallthru
    _
  // Predicated region
  $region46: #{tpu_custom_call.1} parent=0 // pred_check
    _
  $region47: #{tpu_custom_call.1} parent=0 // pred_check_branch
    %865 = sbr.rel (0) target = $region49
  $region48: #{tpu_custom_call.1} parent=0 // pred_region
    _
  $region49: #{tpu_custom_call.1} parent=0 // pred_fallthru
    _

</llo_original>
